<compile_context>
chip_gen: v5e
topology: v5e:2x2
jax: 0.10.0
libtpu: 0.0.40
codegen_flags: <defaults>
</compile_context>

<pallas_src>
import numpy as np
import jax
import jax.numpy as jnp
from jax.experimental import pallas as pl
from jax.experimental.pallas import tpu as pltpu

_NEG_INF = -1e30


# ----------------------------------------------------------------------------
# Pallas kernel: block-diagonal dual GAT (bend | section) + weighted combine.
# ----------------------------------------------------------------------------
def _fused_gat_kernel(a_dst_ref, a_src_ref, edge_ref, h_ref,
                      bias_b_ref, bias_s_ref, out_ref):
    n = out_ref.shape[1]                                  # Ntot (rows per half)

    # Build logits in VMEM: masked edge bias (-1e30 at non-edges / off-block)
    # + rank-1 destination/source attention terms.  -1e30 swamps the O(10)
    # rank-1 terms, so exp still underflows to exactly 0 at non-edges.
    logits = (edge_ref[...].astype(jnp.float32)
              + a_dst_ref[...] + a_src_ref[...])          # (cb, 2n, 2n) f32

    # GATConv leaky_relu(negative_slope=0.2) on the logits, then row softmax.
    a = jnp.where(logits > 0, logits, 0.2 * logits)
    m = jnp.max(a, axis=-1, keepdims=True)
    p = jnp.exp(a - m)
    denom = jnp.sum(p, axis=-1, keepdims=True)
    attn = p * pl.reciprocal(denom, approx=True)          # EUP slot, not VALU

    # Single bf16 MXU pass over the merged block-diagonal problem (f32 acc).
    out = jnp.einsum('bij,bjc->bic', attn.astype(jnp.bfloat16), h_ref[...],
                     preferred_element_type=jnp.float32)  # (cb, 2n, C)

    out_b = out[:, :n, :] + bias_b_ref[...]               # bend half (+ w0*bias_b)
    out_b = jnp.where(out_b > 0, out_b, 0.01 * out_b)     # F.leaky_relu_ (bend)
    out_s = out[:, n:, :] + bias_s_ref[...]               # section half (+ w1*bias_s)
    out_ref[...] = (out_b + out_s).astype(out_ref.dtype)


def _num_batch_chunks(batch):
    """Grid steps over the batch: one big step on single-TC chips (v5e/v6e),
    two 'parallel' steps on multi-TensorCore chips (v3/v4/v7x)."""
    try:
        kind = jax.devices()[0].device_kind.lower().replace(" ", "")
    except Exception:
        kind = ""
    single_tc = any(t in kind for t in ("v5lite", "v5e", "v6lite", "v6e"))
    n = 1 if single_tc else 2
    if batch % n != 0:
        n = 1
    return max(1, min(n, batch))


def fused_dual_gat(a_dst, a_src, edge_bias, h_cat, bias_b, bias_s, ntot):
    """a_dst: (B, M, 1) f32; a_src: (B, 1, M) f32; edge_bias: (B, M, M) bf16;
    h_cat: (B, M, C) bf16; bias_*: (1, 1, C) f32; M = 2*ntot."""
    B, M, _ = edge_bias.shape
    C = h_cat.shape[-1]
    n_chunks = _num_batch_chunks(B)
    cb = B // n_chunks
    return pl.pallas_call(
        _fused_gat_kernel,
        out_shape=jax.ShapeDtypeStruct((B, ntot, C), jnp.float32),
        grid=(n_chunks,),
        in_specs=[
            pl.BlockSpec((cb, M, 1), lambda b: (b, 0, 0)),   # a_dst (rows/targets)
            pl.BlockSpec((cb, 1, M), lambda b: (b, 0, 0)),   # a_src (cols/sources)
            pl.BlockSpec((cb, M, M), lambda b: (b, 0, 0)),   # masked edge bias (bf16)
            pl.BlockSpec((cb, M, C), lambda b: (b, 0, 0)),   # [w0*h_b ; w1*h_s] (bf16)
            pl.BlockSpec((1, 1, C), lambda b: (0, 0, 0)),    # w0 * bias_b
            pl.BlockSpec((1, 1, C), lambda b: (0, 0, 0)),    # w1 * bias_s
        ],
        out_specs=pl.BlockSpec((cb, ntot, C), lambda b: (b, 0, 0)),
        compiler_params=pltpu.CompilerParams(
            dimension_semantics=("parallel",)),
    )(a_dst, a_src, edge_bias, h_cat, bias_b, bias_s)


# ----------------------------------------------------------------------------
# Glue: edge_index -> dense (target, source) edge-attention bias with the
# adjacency mask folded in (-1e30 at non-edges), including GATConv's
# remove_self_loops + add_self_loops(fill_value='mean').  Static structure is
# host NumPy; only per-batch edge values go through XLA.
# ----------------------------------------------------------------------------
def _dense_edge_bias(edge_index, edge_attr_enc, num_nodes, w_edge, att_edge):
    src = np.asarray(edge_index[0])
    tgt = np.asarray(edge_index[1])
    keep = np.nonzero(src != tgt)[0]                      # remove_self_loops
    src, tgt = src[keep], tgt[keep]
    edge_attr_enc = edge_attr_enc[:, keep, :]
    B, _, d = edge_attr_enc.shape

    # self-loop attr = mean of incoming encoded edge attrs per target node
    counts = np.maximum(np.bincount(tgt, minlength=num_nodes), 1).astype(np.float32)
    sums = jnp.zeros((B, num_nodes, d), jnp.float32).at[:, tgt, :].add(edge_attr_enc)
    loop_attr = sums / counts[None, :, None]

    loop_idx = np.arange(num_nodes, dtype=src.dtype)
    all_src = np.concatenate([src, loop_idx])
    all_tgt = np.concatenate([tgt, loop_idx])
    all_attr = jnp.concatenate([edge_attr_enc, loop_attr], axis=1)     # (B, E', d)

    # per-edge scalar contribution:  attr . (W_edge @ att_edge)
    v = w_edge @ att_edge.reshape(-1)                                  # (d,)
    alpha_edge = jnp.einsum('bed,d->be', all_attr, v)                  # (B, E')

    # every target row has at least its self-loop -> softmax is well defined
    assert np.all(np.bincount(all_tgt, minlength=num_nodes) > 0)

    # NOTE: duplicate (tgt, src) pairs would collapse to the last value (GATConv
    # treats multi-edges as separate softmax entries); test inputs have none.
    dense = jnp.full((B, num_nodes, num_nodes), _NEG_INF, jnp.float32
                     ).at[:, all_tgt, all_src].set(alpha_edge)
    return dense


def _prepare_dense_inputs(params, x, section_edge_index, bend_edge_index,
                          section_edge_attr, bend_edge_attr):
    B, S, Nps, F_in = x.shape
    Ntot = S * Nps
    M = 2 * Ntot
    C = params['w_b'].shape[1]

    # self.edge_encoder (nn.Linear(edge_dim, edge_dim))
    enc_bend = bend_edge_attr @ params['w_enc'] + params['b_enc']
    enc_sec = section_edge_attr @ params['w_enc'] + params['b_enc']

    # hoisted node transforms: one batched matmul per GATConv (not per graph)
    x_flat = x.reshape(B, Ntot, F_in)
    h_b = jnp.einsum('bnf,fc->bnc', x_flat, params['w_b'])
    h_s = jnp.einsum('bnf,fc->bnc', x_flat, params['w_s'])

    # per-node rank-1 attention terms (dst = rows/targets, src = cols/sources)
    a_src_b = jnp.einsum('bnc,c->bn', h_b, params['att_src_b'].reshape(-1))
    a_dst_b = jnp.einsum('bnc,c->bn', h_b, params['att_dst_b'].reshape(-1))
    a_src_s = jnp.einsum('bnc,c->bn', h_s, params['att_src_s'].reshape(-1))
    a_dst_s = jnp.einsum('bnc,c->bn', h_s, params['att_dst_s'].reshape(-1))

    # dense masked edge biases (bend graph over Ntot nodes, section over Nps)
    edge_b = _dense_edge_bias(bend_edge_index, enc_bend, Ntot,
                              params['w_edge_b'], params['att_edge_b'])
    edge_s = _dense_edge_bias(section_edge_index, enc_sec, Nps,
                              params['w_edge_s'], params['att_edge_s'])

    # section path as block-diagonal attention over all Ntot nodes (the same
    # per-section edge pattern / attrs are reused for every section)
    node = np.arange(Ntot)
    mod = node % Nps
    same_sec = (node[:, None] // Nps) == (node[None, :] // Nps)
    edge_s_full = jnp.where(jnp.asarray(same_sec),
                            edge_s[:, mod[:, None], mod[None, :]], _NEG_INF)

    # merge bend + section into ONE block-diagonal problem of size M = 2*Ntot
    edge_cat = jnp.full((B, M, M), _NEG_INF, jnp.float32)
    edge_cat = edge_cat.at[:, :Ntot, :Ntot].set(edge_b)
    edge_cat = edge_cat.at[:, Ntot:, Ntot:].set(edge_s_full)
    edge_cat = edge_cat.astype(jnp.bfloat16)              # O(Ntot^2) input -> bf16

    a_dst = jnp.concatenate([a_dst_b, a_dst_s], axis=1).reshape(B, M, 1)
    a_src = jnp.concatenate([a_src_b, a_src_s], axis=1).reshape(B, 1, M)

    # fold softmax(weights) + final combine into the kernel by pre-scaling
    # (exact: w0, w1 > 0  =>  w * leaky_relu(z) == leaky_relu(w * z))
    w = jax.nn.softmax(params['weights'])
    h_cat = jnp.concatenate([w[0] * h_b, w[1] * h_s], axis=1).astype(jnp.bfloat16)
    bias_b = (w[0] * params['bias_b']).reshape(1, 1, C)
    bias_s = (w[1] * params['bias_s']).reshape(1, 1, C)
    return a_dst, a_src, edge_cat, h_cat, bias_b, bias_s, Ntot


# ----------------------------------------------------------------------------
# GNNLayer forward (eval mode) + pure-jnp reference for the kernel
# ----------------------------------------------------------------------------
def gnn_layer_forward(params, x, section_edge_index, bend_edge_index,
                      section_edge_attr, bend_edge_attr):
    (a_dst, a_src, edge_cat, h_cat, bias_b, bias_s, ntot) = _prepare_dense_inputs(
        params, x, section_edge_index, bend_edge_index,
        section_edge_attr, bend_edge_attr)
    return fused_dual_gat(a_dst, a_src, edge_cat, h_cat, bias_b, bias_s, ntot)


def gnn_layer_reference(params, x, section_edge_index, bend_edge_index,
                        section_edge_attr, bend_edge_attr):
    (a_dst, a_src, edge_cat, h_cat, bias_b, bias_s, ntot) = _prepare_dense_inputs(
        params, x, section_edge_index, bend_edge_index,
        section_edge_attr, bend_edge_attr)
    logits = edge_cat.astype(jnp.float32) + a_dst + a_src
    a = jnp.where(logits > 0, logits, 0.2 * logits)
    attn = jax.nn.softmax(a, axis=-1)
    out = jnp.einsum('bij,bjc->bic', attn, h_cat.astype(jnp.float32))
    out_b = out[:, :ntot] + bias_b
    out_b = jnp.where(out_b > 0, out_b, 0.01 * out_b)
    out_s = out[:, ntot:] + bias_s
    return out_b + out_s


# ----------------------------------------------------------------------------
# Deterministic parameter init (shapes from GNNLayer.__init__)
# ----------------------------------------------------------------------------
def init_params(key, in_channels, out_channels, edge_dim):
    ks = jax.random.split(key, 11)

    def glorot(k, shape):
        fan_in, fan_out = shape[0], shape[-1]
        lim = (6.0 / (fan_in + fan_out)) ** 0.5
        return jax.random.uniform(k, shape, jnp.float32, -lim, lim)

    return dict(
        w_enc=glorot(ks[0], (edge_dim, edge_dim)),
        b_enc=jnp.zeros((edge_dim,), jnp.float32),
        # gat_b (GATConv heads=1, concat=False, edge_dim=edge_dim)
        w_b=glorot(ks[1], (in_channels, out_channels)),
        att_src_b=glorot(ks[2], (1, out_channels)),
        att_dst_b=glorot(ks[3], (1, out_channels)),
        w_edge_b=glorot(ks[4], (edge_dim, out_channels)),
        att_edge_b=glorot(ks[5], (1, out_channels)),
        bias_b=jnp.zeros((1, out_channels), jnp.float32),
        # gat_s
        w_s=glorot(ks[6], (in_channels, out_channels)),
        att_src_s=glorot(ks[7], (1, out_channels)),
        att_dst_s=glorot(ks[8], (1, out_channels)),
        w_edge_s=glorot(ks[9], (edge_dim, out_channels)),
        att_edge_s=glorot(ks[10], (1, out_channels)),
        bias_s=jnp.zeros((1, out_channels), jnp.float32),
        weights=jnp.ones((2,), jnp.float32),          # nn.Parameter(torch.ones(2))
    )


if __name__ == "__main__":
    key = jax.random.PRNGKey(0)
    # out_channels = 128 keeps every kernel h/out load/store lane-dense.
    B, S, Nps, F_in, C_out, E_dim = 2, 4, 8, 16, 128, 4
    Ntot = S * Nps
    k_x, k_ba, k_sa, k_p = jax.random.split(key, 4)

    x = jax.random.normal(k_x, (B, S, Nps, F_in), jnp.float32)

    # section graph: bidirectional ring over the Nps nodes of one section
    r = np.arange(Nps)
    section_edge_index = jnp.asarray(
        np.stack([np.concatenate([r, (r + 1) % Nps]),
                  np.concatenate([(r + 1) % Nps, r])]), jnp.int32)     # (2, 16)

    # bend graph: bidirectional edges between same node of adjacent sections
    base = np.arange(Ntot - Nps)
    bend_edge_index = jnp.asarray(
        np.stack([np.concatenate([base, base + Nps]),
                  np.concatenate([base + Nps, base])]), jnp.int32)     # (2, 48)

    section_edge_attr = jax.random.normal(
        k_sa, (B, section_edge_index.shape[1], E_dim), jnp.float32)
    bend_edge_attr = jax.random.normal(
        k_ba, (B, bend_edge_index.shape[1], E_dim), jnp.float32)

    params = init_params(k_p, F_in, C_out, E_dim)

    out = gnn_layer_forward(params, x, section_edge_index, bend_edge_index,
                            section_edge_attr, bend_edge_attr)
    jax.block_until_ready(out)
    assert out.shape == (B, Ntot, C_out)

    ref = gnn_layer_reference(params, x, section_edge_index, bend_edge_index,
                              section_edge_attr, bend_edge_attr)
    np.testing.assert_allclose(np.asarray(out), np.asarray(ref),
                               rtol=2e-2, atol=2e-2)
    # TODO(synk): drop_edge / GATConv attention dropout are training-only
    # stochastic ops; eval-mode forward implemented.
    print("KERNEL_OK")
</pallas_src>

<mosaic_0001>
module attributes {stable_mosaic.version = 11 : i64} {
  func.func @_fused_gat_kernel(%arg0: i32, %arg1: memref<1x64x1xf32, #tpu.memory_space<vmem>>, %arg2: memref<1x1x64xf32, #tpu.memory_space<vmem>>, %arg3: memref<1x64x64xbf16, #tpu.memory_space<vmem>>, %arg4: memref<1x64x128xbf16, #tpu.memory_space<vmem>>, %arg5: memref<1x1x128xf32, #tpu.memory_space<vmem>>, %arg6: memref<1x1x128xf32, #tpu.memory_space<vmem>>, %arg7: memref<1x32x128xf32, #tpu.memory_space<vmem>>) attributes {dimension_semantics = [#tpu.dimension_semantics<parallel>], iteration_bounds = array<i64: 2>, scalar_prefetch = 0 : i64, scratch_operands = 0 : i64, tpu.core_type = #tpu.core_type<tc>, window_params = [{transform_indices = @transform_0, window_bounds = array<i64: 1, 64, 1>}, {transform_indices = @transform_1, window_bounds = array<i64: 1, 1, 64>}, {transform_indices = @transform_2, window_bounds = array<i64: 1, 64, 64>}, {transform_indices = @transform_3, window_bounds = array<i64: 1, 64, 128>}, {pipeline_mode = #tpu.pipeline_mode<synchronous>, transform_indices = @transform_4, window_bounds = array<i64: 1, 1, 128>}, {pipeline_mode = #tpu.pipeline_mode<synchronous>, transform_indices = @transform_5, window_bounds = array<i64: 1, 1, 128>}, {transform_indices = @transform_6, window_bounds = array<i64: 1, 32, 128>}]} {
    %c0 = arith.constant 0 : index
    %c0_0 = arith.constant 0 : index
    %c0_1 = arith.constant 0 : index
    %0 = vector.load %arg3[%c0, %c0_0, %c0_1] : memref<1x64x64xbf16, #tpu.memory_space<vmem>>, vector<1x64x64xbf16>
    %1 = arith.extf %0 : vector<1x64x64xbf16> to vector<1x64x64xf32>
    %c0_2 = arith.constant 0 : index
    %c0_3 = arith.constant 0 : index
    %c0_4 = arith.constant 0 : index
    %2 = vector.load %arg1[%c0_2, %c0_3, %c0_4] : memref<1x64x1xf32, #tpu.memory_space<vmem>>, vector<1x64x1xf32>
    %3 = vector.broadcast %2 : vector<1x64x1xf32> to vector<1x64x64xf32>
    %4 = arith.addf %1, %3 : vector<1x64x64xf32>
    %c0_5 = arith.constant 0 : index
    %c0_6 = arith.constant 0 : index
    %c0_7 = arith.constant 0 : index
    %5 = vector.load %arg2[%c0_5, %c0_6, %c0_7] : memref<1x1x64xf32, #tpu.memory_space<vmem>>, vector<1x1x64xf32>
    %6 = vector.broadcast %5 : vector<1x1x64xf32> to vector<1x64x64xf32>
    %7 = arith.addf %4, %6 : vector<1x64x64xf32>
    %cst = arith.constant 0.000000e+00 : f32
    %8 = vector.broadcast %cst : f32 to vector<1x64x64xf32>
    %9 = arith.cmpf ogt, %7, %8 : vector<1x64x64xf32>
    %cst_8 = arith.constant 2.000000e-01 : f32
    %10 = vector.broadcast %cst_8 : f32 to vector<1x64x64xf32>
    %11 = arith.mulf %10, %7 : vector<1x64x64xf32>
    %12 = arith.select %9, %7, %11 : vector<1x64x64xi1>, vector<1x64x64xf32>
    %cst_9 = arith.constant dense<0xFF800000> : vector<1x64xf32>
    %13 = vector.multi_reduction <maximumf>, %12, %cst_9 [2] : vector<1x64x64xf32> to vector<1x64xf32>
    %14 = vector.shape_cast %13 : vector<1x64xf32> to vector<1x64x1xf32>
    %15 = vector.broadcast %14 : vector<1x64x1xf32> to vector<1x64x64xf32>
    %16 = arith.subf %12, %15 : vector<1x64x64xf32>
    %17 = math.exp %16 : vector<1x64x64xf32>
    %cst_10 = arith.constant dense<0.000000e+00> : vector<1x64xf32>
    %18 = vector.multi_reduction <add>, %17, %cst_10 [2] : vector<1x64x64xf32> to vector<1x64xf32>
    %19 = vector.shape_cast %18 : vector<1x64xf32> to vector<1x64x1xf32>
    %20 = tpu.reciprocal %19 {approx = true} : vector<1x64x1xf32> -> vector<1x64x1xf32>
    %21 = vector.broadcast %20 : vector<1x64x1xf32> to vector<1x64x64xf32>
    %22 = arith.mulf %17, %21 : vector<1x64x64xf32>
    %23 = arith.truncf %22 : vector<1x64x64xf32> to vector<1x64x64xbf16>
    %c0_11 = arith.constant 0 : index
    %c0_12 = arith.constant 0 : index
    %c0_13 = arith.constant 0 : index
    %24 = vector.load %arg4[%c0_11, %c0_12, %c0_13] : memref<1x64x128xbf16, #tpu.memory_space<vmem>>, vector<1x64x128xbf16>
    "tpu.trace_start"() <{level = 10 : i32, message = "bij,bjc->bic"}> : () -> ()
    %cst_14 = arith.constant dense<0.000000e+00> : vector<1x64x128xf32>
    %25 = tpu.matmul %23, %24, %cst_14 {dimension_numbers = #tpu.dot_dimension_numbers<[2], [1], [1], [2], [0, 0, 0, 1, 1, 2], [0], [0]>} : vector<1x64x64xbf16>, vector<1x64x128xbf16>, vector<1x64x128xf32> -> vector<1x64x128xf32>
    "tpu.trace_stop"() : () -> ()
    %26 = vector.extract_strided_slice %25 {offsets = [0, 0, 0], sizes = [1, 32, 128], strides = [1, 1, 1]} : vector<1x64x128xf32> to vector<1x32x128xf32>
    %c0_15 = arith.constant 0 : index
    %c0_16 = arith.constant 0 : index
    %c0_17 = arith.constant 0 : index
    %27 = vector.load %arg5[%c0_15, %c0_16, %c0_17] : memref<1x1x128xf32, #tpu.memory_space<vmem>>, vector<1x1x128xf32>
    %28 = vector.broadcast %27 : vector<1x1x128xf32> to vector<1x32x128xf32>
    %29 = arith.addf %26, %28 : vector<1x32x128xf32>
    %cst_18 = arith.constant 0.000000e+00 : f32
    %30 = vector.broadcast %cst_18 : f32 to vector<1x32x128xf32>
    %31 = arith.cmpf ogt, %29, %30 : vector<1x32x128xf32>
    %cst_19 = arith.constant 0.00999999977 : f32
    %32 = vector.broadcast %cst_19 : f32 to vector<1x32x128xf32>
    %33 = arith.mulf %32, %29 : vector<1x32x128xf32>
    %34 = arith.select %31, %29, %33 : vector<1x32x128xi1>, vector<1x32x128xf32>
    %35 = vector.extract_strided_slice %25 {offsets = [0, 32, 0], sizes = [1, 32, 128], strides = [1, 1, 1]} : vector<1x64x128xf32> to vector<1x32x128xf32>
    %c0_20 = arith.constant 0 : index
    %c0_21 = arith.constant 0 : index
    %c0_22 = arith.constant 0 : index
    %36 = vector.load %arg6[%c0_20, %c0_21, %c0_22] : memref<1x1x128xf32, #tpu.memory_space<vmem>>, vector<1x1x128xf32>
    %37 = vector.broadcast %36 : vector<1x1x128xf32> to vector<1x32x128xf32>
    %38 = arith.addf %35, %37 : vector<1x32x128xf32>
    %39 = arith.addf %34, %38 : vector<1x32x128xf32>
    %c0_23 = arith.constant 0 : index
    %c0_24 = arith.constant 0 : index
    %c0_25 = arith.constant 0 : index
    %40 = vector.load %arg7[%c0_23, %c0_24, %c0_25] : memref<1x32x128xf32, #tpu.memory_space<vmem>>, vector<1x32x128xf32>
    tpu.vector_store %arg7[%c0_23, %c0_24, %c0_25], %39 {strides = array<i32>} : memref<1x32x128xf32, #tpu.memory_space<vmem>>, vector<1x32x128xf32>,
    return
  }
  func.func @transform_0(%arg0: i32) -> (i32, i32, i32) {
    %c0_i32 = arith.constant 0 : i32
    %c0_i32_0 = arith.constant 0 : i32
    %c0_i32_1 = arith.constant 0 : i32
    return %arg0, %c0_i32, %c0_i32_0 : i32, i32, i32
  }
  func.func @transform_1(%arg0: i32) -> (i32, i32, i32) {
    %c0_i32 = arith.constant 0 : i32
    %c0_i32_0 = arith.constant 0 : i32
    %c0_i32_1 = arith.constant 0 : i32
    return %arg0, %c0_i32, %c0_i32_0 : i32, i32, i32
  }
  func.func @transform_2(%arg0: i32) -> (i32, i32, i32) {
    %c0_i32 = arith.constant 0 : i32
    %c0_i32_0 = arith.constant 0 : i32
    %c0_i32_1 = arith.constant 0 : i32
    return %arg0, %c0_i32, %c0_i32_0 : i32, i32, i32
  }
  func.func @transform_3(%arg0: i32) -> (i32, i32, i32) {
    %c0_i32 = arith.constant 0 : i32
    %c0_i32_0 = arith.constant 0 : i32
    %c0_i32_1 = arith.constant 0 : i32
    return %arg0, %c0_i32, %c0_i32_0 : i32, i32, i32
  }
  func.func @transform_4(%arg0: i32) -> (i32, i32, i32) {
    %c0_i32 = arith.constant 0 : i32
    %c0_i32_0 = arith.constant 0 : i32
    %c0_i32_1 = arith.constant 0 : i32
    %c0_i32_2 = arith.constant 0 : i32
    return %c0_i32, %c0_i32_0, %c0_i32_1 : i32, i32, i32
  }
  func.func @transform_5(%arg0: i32) -> (i32, i32, i32) {
    %c0_i32 = arith.constant 0 : i32
    %c0_i32_0 = arith.constant 0 : i32
    %c0_i32_1 = arith.constant 0 : i32
    %c0_i32_2 = arith.constant 0 : i32
    return %c0_i32, %c0_i32_0, %c0_i32_1 : i32, i32, i32
  }
  func.func @transform_6(%arg0: i32) -> (i32, i32, i32) {
    %c0_i32 = arith.constant 0 : i32
    %c0_i32_0 = arith.constant 0 : i32
    %c0_i32_1 = arith.constant 0 : i32
    return %arg0, %c0_i32, %c0_i32_0 : i32, i32, i32
  }
}

</mosaic_0001>

<llo_original>
// kernel: tpu_custom_call.1
$region0: #{tpu_custom_call.1}
  #allocation0 [shape = 'u32[]', space=smem, size = 0x4, offset = 0x4, fixed_abs, tag = 'smem constant byte address 0x4 - core index']
  #allocation1 [shape = 'u32[72,128]{1,0:T(1,128)}', space=vmem, size = 0x9000, scoped, tag = 'internal scratch']
  %s0 = inlined_call_operand.vmem [shape: f32[2,64,1], index: 0, kind: input, shape index: {}]
  %s1 = inlined_call_operand.vmem [shape: f32[2,1,64], index: 1, kind: input, shape index: {}]
  %s2 = inlined_call_operand.vmem [shape: bf16[2,64,64], index: 2, kind: input, shape index: {}]
  %s3 = inlined_call_operand.vmem [shape: bf16[2,64,128], index: 3, kind: input, shape index: {}]
  %s4 = inlined_call_operand.vmem [shape: f32[1,1,128], index: 4, kind: input, shape index: {}]
  %s5 = inlined_call_operand.vmem [shape: f32[1,1,128], index: 5, kind: input, shape index: {}]
  %s6 = inlined_call_operand.hbm [shape: f32[2,32,128], index: 6, kind: output, shape index: {}]
  %s7 = sld [smem:[#allocation0]]
  $region57: #{tpu_custom_call.1} parent=0
    _
  %s9 = ssub.s32 1, %s7
  %s10 = scalar_select 0, %s9, %s7
  $region1: #{tpu_custom_call.1} parent=0
    #allocation2 [shape = 'u8[32768]{0}', space=vmem, size = 0x8000, scoped, tag = 'output window, operand 0']
    #allocation3 [shape = 's32[2]{0}', space=sflag, size = 0x8, scoped, tag = 'scoped memory for tpu_custom_call.1']
    %11 = vsyncpa [#allocation3], 0
    %s12 = scalar_lea.sflag [#allocation3], 1
    %13 = vsyncpa %s12, 0
    loop: start=0, step=1, limit=4
    $region2: #{tpu_custom_call.1} parent=1 // loop_pre_header
      _
    $region3: #{tpu_custom_call.1} parent=1 // loop_header
      %s15 = sphi 0, %s19
      %p16 = scmp.ge.s32.totalorder %s15, 4
      %s25 = sphi 0, %s27
      %s28 = sphi 0, %s25
      %s29 = sphi 0, %s28
      %s45 = sphi 0, %s29
      %s51 = sphi 0, %s53
      %s54 = sphi 0, %s51
      %s55 = sphi 0, %s54
      %s71 = sphi 0, %s55
      %s77 = sphi 0, %s79
      %s80 = sphi 0, %s77
      %s81 = sphi 0, %s80
      %s97 = sphi 0, %s81
      %s103 = sphi 0, %s105
      %s106 = sphi 0, %s103
      %s107 = sphi 0, %s106
      %s123 = sphi 0, %s107
      %s127 = sphi 0, %s127
      %s129 = sphi 0, %s127
      %s130 = sphi 0, %s129
      %s144 = sphi 0, %s130
      %s148 = sphi 0, %s148
      %s150 = sphi 0, %s148
      %s151 = sphi 0, %s150
      %s165 = sphi 0, %s151
      %s171 = sphi 0, %s173
      %s174 = sphi 0, %s171
      %s175 = sphi 0, %s174
      %s191 = sphi 0, %s175
    $region4: #{tpu_custom_call.1} parent=1 // loop_header_branch
      %18 = sbr.rel (%p16) target = $region8
    $region5: #{tpu_custom_call.1} parent=1 // loop_body
      %s20 = ssub.s32 %s15, 1
      %s21 = ssub.s32 %s15, 2
      %s22 = sadd.s32 %s15, 1
      %s23 = ssub.s32 %s15, %s22
      %p24 = scmp.eq.s32.totalorder %s23, 0
      %s26 = sadd.s32 %s25, 1
      %s27 = scalar_select %p24, %s25, %s26
      %p30 = pneg %p24
      %p31 = scmp.eq.s32.totalorder %s15, 1
      %p32 = por %p30, %p31
      %p33 = scmp.ne.s32.totalorder %s25, %s28
      %p34 = scmp.eq.s32.totalorder %s15, 0
      %p35 = por %p33, %p34
      %p36 = scmp.ne.s32.totalorder %s25, %s28
      %p37 = scmp.eq.s32.totalorder %s20, 1
      %p38 = por %p36, %p37
      %p39 = scmp.ne.s32.totalorder %s28, %s29
      %p40 = scmp.eq.s32.totalorder %s20, 0
      %p41 = por %p39, %p40
      %p42 = scmp.ne.s32.totalorder %s28, %s29
      %p43 = scmp.eq.s32.totalorder %s21, 1
      %p44 = por %p42, %p43
      %p46 = scmp.ne.s32.totalorder %s29, %s45
      %p47 = scmp.eq.s32.totalorder %s21, 0
      %p48 = por %p46, %p47
      %s49 = ssub.s32 %s15, %s22
      %p50 = scmp.eq.s32.totalorder %s49, 0
      %s52 = sadd.s32 %s51, 1
      %s53 = scalar_select %p50, %s51, %s52
      %p56 = pneg %p50
      %p57 = scmp.eq.s32.totalorder %s15, 1
      %p58 = por %p56, %p57
      %p59 = scmp.ne.s32.totalorder %s51, %s54
      %p60 = scmp.eq.s32.totalorder %s15, 0
      %p61 = por %p59, %p60
      %p62 = scmp.ne.s32.totalorder %s51, %s54
      %p63 = scmp.eq.s32.totalorder %s20, 1
      %p64 = por %p62, %p63
      %p65 = scmp.ne.s32.totalorder %s54, %s55
      %p66 = scmp.eq.s32.totalorder %s20, 0
      %p67 = por %p65, %p66
      %p68 = scmp.ne.s32.totalorder %s54, %s55
      %p69 = scmp.eq.s32.totalorder %s21, 1
      %p70 = por %p68, %p69
      %p72 = scmp.ne.s32.totalorder %s55, %s71
      %p73 = scmp.eq.s32.totalorder %s21, 0
      %p74 = por %p72, %p73
      %s75 = ssub.s32 %s15, %s22
      %p76 = scmp.eq.s32.totalorder %s75, 0
      %s78 = sadd.s32 %s77, 1
      %s79 = scalar_select %p76, %s77, %s78
      %p82 = pneg %p76
      %p83 = scmp.eq.s32.totalorder %s15, 1
      %p84 = por %p82, %p83
      %p85 = scmp.ne.s32.totalorder %s77, %s80
      %p86 = scmp.eq.s32.totalorder %s15, 0
      %p87 = por %p85, %p86
      %p88 = scmp.ne.s32.totalorder %s77, %s80
      %p89 = scmp.eq.s32.totalorder %s20, 1
      %p90 = por %p88, %p89
      %p91 = scmp.ne.s32.totalorder %s80, %s81
      %p92 = scmp.eq.s32.totalorder %s20, 0
      %p93 = por %p91, %p92
      %p94 = scmp.ne.s32.totalorder %s80, %s81
      %p95 = scmp.eq.s32.totalorder %s21, 1
      %p96 = por %p94, %p95
      %p98 = scmp.ne.s32.totalorder %s81, %s97
      %p99 = scmp.eq.s32.totalorder %s21, 0
      %p100 = por %p98, %p99
      %s101 = ssub.s32 %s15, %s22
      %p102 = scmp.eq.s32.totalorder %s101, 0
      %s104 = sadd.s32 %s103, 1
      %s105 = scalar_select %p102, %s103, %s104
      %p108 = pneg %p102
      %p109 = scmp.eq.s32.totalorder %s15, 1
      %p110 = por %p108, %p109
      %p111 = scmp.ne.s32.totalorder %s103, %s106
      %p112 = scmp.eq.s32.totalorder %s15, 0
      %p113 = por %p111, %p112
      %p114 = scmp.ne.s32.totalorder %s103, %s106
      %p115 = scmp.eq.s32.totalorder %s20, 1
      %p116 = por %p114, %p115
      %p117 = scmp.ne.s32.totalorder %s106, %s107
      %p118 = scmp.eq.s32.totalorder %s20, 0
      %p119 = por %p117, %p118
      %p120 = scmp.ne.s32.totalorder %s106, %s107
      %p121 = scmp.eq.s32.totalorder %s21, 1
      %p122 = por %p120, %p121
      %p124 = scmp.ne.s32.totalorder %s107, %s123
      %p125 = scmp.eq.s32.totalorder %s21, 0
      %p126 = por %p124, %p125
      %s128 = sadd.s32 %s127, 1
      %p131 = scmp.eq.s32.totalorder %s15, 1
      %p132 = scmp.ne.s32.totalorder %s127, %s129
      %p133 = scmp.eq.s32.totalorder %s15, 0
      %p134 = por %p132, %p133
      %p135 = scmp.ne.s32.totalorder %s127, %s129
      %p136 = scmp.eq.s32.totalorder %s20, 1
      %p137 = por %p135, %p136
      %p138 = scmp.ne.s32.totalorder %s129, %s130
      %p139 = scmp.eq.s32.totalorder %s20, 0
      %p140 = por %p138, %p139
      %p141 = scmp.ne.s32.totalorder %s129, %s130
      %p142 = scmp.eq.s32.totalorder %s21, 1
      %p143 = por %p141, %p142
      %p145 = scmp.ne.s32.totalorder %s130, %s144
      %p146 = scmp.eq.s32.totalorder %s21, 0
      %p147 = por %p145, %p146
      %s149 = sadd.s32 %s148, 1
      %p152 = scmp.eq.s32.totalorder %s15, 1
      %p153 = scmp.ne.s32.totalorder %s148, %s150
      %p154 = scmp.eq.s32.totalorder %s15, 0
      %p155 = por %p153, %p154
      %p156 = scmp.ne.s32.totalorder %s148, %s150
      %p157 = scmp.eq.s32.totalorder %s20, 1
      %p158 = por %p156, %p157
      %p159 = scmp.ne.s32.totalorder %s150, %s151
      %p160 = scmp.eq.s32.totalorder %s20, 0
      %p161 = por %p159, %p160
      %p162 = scmp.ne.s32.totalorder %s150, %s151
      %p163 = scmp.eq.s32.totalorder %s21, 1
      %p164 = por %p162, %p163
      %p166 = scmp.ne.s32.totalorder %s151, %s165
      %p167 = scmp.eq.s32.totalorder %s21, 0
      %p168 = por %p166, %p167
      %s169 = ssub.s32 %s15, %s22
      %p170 = scmp.eq.s32.totalorder %s169, 0
      %s172 = sadd.s32 %s171, 1
      %s173 = scalar_select %p170, %s171, %s172
      %p176 = pneg %p170
      %p177 = scmp.eq.s32.totalorder %s15, 1
      %p178 = por %p176, %p177
      %p179 = scmp.ne.s32.totalorder %s171, %s174
      %p180 = scmp.eq.s32.totalorder %s15, 0
      %p181 = por %p179, %p180
      %p182 = scmp.ne.s32.totalorder %s171, %s174
      %p183 = scmp.eq.s32.totalorder %s20, 1
      %p184 = por %p182, %p183
      %p185 = scmp.ne.s32.totalorder %s174, %s175
      %p186 = scmp.eq.s32.totalorder %s20, 0
      %p187 = por %p185, %p186
      %p188 = scmp.ne.s32.totalorder %s174, %s175
      %p189 = scmp.eq.s32.totalorder %s21, 1
      %p190 = por %p188, %p189
      %p192 = scmp.ne.s32.totalorder %s175, %s191
      %p193 = scmp.eq.s32.totalorder %s21, 0
      %p194 = por %p192, %p193
      %p195 = scmp.le.s32.totalorder 1, %s15
      %p196 = scmp.lt.s32.totalorder %s15, 3
      %p197 = pnand %p195, %p196
      %p198 = pneg %p197
      // Predicated region
      $region9: #{tpu_custom_call.1} parent=5 // pred_check
        _
      $region10: #{tpu_custom_call.1} parent=5 // pred_check_branch
        %200 = sbr.rel (%p197) target = $region12
      $region11: #{tpu_custom_call.1} parent=5 // pred_region
        %s201 = ssub.s32 %s15, 1
        // Predicated region
        $region13: #{tpu_custom_call.1} parent=11 // pred_check
          %p202 = pneg %p140
        $region14: #{tpu_custom_call.1} parent=11 // pred_check_branch
          %204 = sbr.rel (%p202) target = $region16
        $region15: #{tpu_custom_call.1} parent=11 // pred_region
          _
        $region16: #{tpu_custom_call.1} parent=11 // pred_fallthru
          _
        // Predicated region
        $region17: #{tpu_custom_call.1} parent=11 // pred_check
          %p205 = pneg %p161
        $region18: #{tpu_custom_call.1} parent=11 // pred_check_branch
          %207 = sbr.rel (%p205) target = $region20
        $region19: #{tpu_custom_call.1} parent=11 // pred_region
          _
        $region20: #{tpu_custom_call.1} parent=11 // pred_fallthru
          _
      $region12: #{tpu_custom_call.1} parent=5 // pred_fallthru
        _
      %p208 = scmp.lt.s32.totalorder %s15, 2
      // Predicated region
      $region21: #{tpu_custom_call.1} parent=5 // pred_check
        %p209 = pneg %p208
      $region22: #{tpu_custom_call.1} parent=5 // pred_check_branch
        %211 = sbr.rel (%p209) target = $region24
      $region23: #{tpu_custom_call.1} parent=5 // pred_region
        // Predicated region
        $region25: #{tpu_custom_call.1} parent=23 // pred_check
          %p212 = pneg %p35
        $region26: #{tpu_custom_call.1} parent=23 // pred_check_branch
          %214 = sbr.rel (%p212) target = $region28
        $region27: #{tpu_custom_call.1} parent=23 // pred_region
          %p215 = scmp.lt.s32.totalorder %s15, 1
          %s216 = scalar_select %p215, %s15, 1
          %s217 = smul.addr %s216, 8
          %s218 = smul.addr %s217, 8
          %s219 = scalar_lea.vmem %s0, %s218
        $region28: #{tpu_custom_call.1} parent=23 // pred_fallthru
          _
        // Predicated region
        $region29: #{tpu_custom_call.1} parent=23 // pred_check
          %p220 = pneg %p61
        $region30: #{tpu_custom_call.1} parent=23 // pred_check_branch
          %222 = sbr.rel (%p220) target = $region32
        $region31: #{tpu_custom_call.1} parent=23 // pred_region
          %p223 = scmp.lt.s32.totalorder %s15, 1
          %s224 = scalar_select %p223, %s15, 1
          %s225 = scalar_lea.vmem %s1, %s224
        $region32: #{tpu_custom_call.1} parent=23 // pred_fallthru
          _
        // Predicated region
        $region33: #{tpu_custom_call.1} parent=23 // pred_check
          %p226 = pneg %p87
        $region34: #{tpu_custom_call.1} parent=23 // pred_check_branch
          %228 = sbr.rel (%p226) target = $region36
        $region35: #{tpu_custom_call.1} parent=23 // pred_region
          %p229 = scmp.lt.s32.totalorder %s15, 1
          %s230 = scalar_select %p229, %s15, 1
          %s231 = smul.addr %s230, 8
          %s232 = smul.addr %s231, 4
          %s233 = scalar_lea.vmem %s2, %s232
        $region36: #{tpu_custom_call.1} parent=23 // pred_fallthru
          _
        // Predicated region
        $region37: #{tpu_custom_call.1} parent=23 // pred_check
          %p234 = pneg %p113
        $region38: #{tpu_custom_call.1} parent=23 // pred_check_branch
          %236 = sbr.rel (%p234) target = $region40
        $region39: #{tpu_custom_call.1} parent=23 // pred_region
          %p237 = scmp.lt.s32.totalorder %s15, 1
          %s238 = scalar_select %p237, %s15, 1
          %s239 = smul.addr %s238, 8
          %s240 = smul.addr %s239, 4
          %s241 = scalar_lea.vmem %s3, %s240
        $region40: #{tpu_custom_call.1} parent=23 // pred_fallthru
          _
      $region24: #{tpu_custom_call.1} parent=5 // pred_fallthru
        _
      %p242 = scmp.le.s32.totalorder 1, %s15
      %p243 = scmp.lt.s32.totalorder %s15, 3
      %p244 = pnand %p242, %p243
      %p245 = pneg %p244
      // Predicated region
      $region41: #{tpu_custom_call.1} parent=5 // pred_check
        _
      $region42: #{tpu_custom_call.1} parent=5 // pred_check_branch
        %247 = sbr.rel (%p244) target = $region44
      $region43: #{tpu_custom_call.1} parent=5 // pred_region
        %s248 = ssub.s32 %s15, 1
        %p249 = scmp.lt.s32.totalorder %s20, 1
        %s250 = scalar_select %p249, %s20, 1
        %s251 = smul.addr %s250, 8
        %s252 = smul.addr %s251, 8
        %s253 = scalar_lea.vmem %s0, %s252
        %p254 = pneg %p41
        %p255 = pneg %p38
        %p256 = scmp.lt.s32.totalorder %s20, 1
        %s257 = scalar_select %p256, %s20, 1
        %s258 = scalar_lea.vmem %s1, %s257
        %p259 = pneg %p67
        %p260 = pneg %p64
        %p261 = scmp.lt.s32.totalorder %s20, 1
        %s262 = scalar_select %p261, %s20, 1
        %s263 = smul.addr %s262, 8
        %s264 = smul.addr %s263, 4
        %s265 = scalar_lea.vmem %s2, %s264
        %p266 = pneg %p93
        %p267 = pneg %p90
        %p268 = scmp.lt.s32.totalorder %s20, 1
        %s269 = scalar_select %p268, %s20, 1
        %s270 = smul.addr %s269, 8
        %s271 = smul.addr %s270, 4
        %s272 = scalar_lea.vmem %s3, %s271
        %p273 = pneg %p119
        %p274 = pneg %p116
        %p275 = pneg %p140
        %p276 = pneg %p137
        %p277 = pneg %p161
        %p278 = pneg %p158
        %p279 = pneg %p187
        %p280 = pneg %p184
        %s281 = sand.u32 %s174, 1
        %s282 = scalar_lea.sflag [#allocation3], %s281
        %s283 = sand.u32 %s174, 1
        %s284 = smul.addr %s283, 32
        %s285 = scalar_lea.vmem [#allocation2], %s284
        %p286 = scmp.lt.s32.totalorder %s20, 1
        %s287 = scalar_select %p286, %s20, 1
        %s288 = smul.addr %s287, 8
        %s289 = smul.addr %s288, 8
        %s290 = scalar_lea.vmem %s0, %s289
        %p291 = scmp.lt.s32.totalorder %s20, 1
        %s292 = scalar_select %p291, %s20, 1
        %s293 = scalar_lea.vmem %s1, %s292
        %p294 = scmp.lt.s32.totalorder %s20, 1
        %s295 = scalar_select %p294, %s20, 1
        %s296 = smul.addr %s295, 8
        %s297 = smul.addr %s296, 4
        %s298 = scalar_lea.vmem %s2, %s297
        %p299 = scmp.lt.s32.totalorder %s20, 1
        %s300 = scalar_select %p299, %s20, 1
        %s301 = smul.addr %s300, 8
        %s302 = smul.addr %s301, 4
        %s303 = scalar_lea.vmem %s3, %s302
        %v305 = vld [vmem:[%s298] sm:$0xf]
        %v306 = vld [vmem:[%s298 + $0x4] sm:$0xf]
        %v307 = vld [vmem:[%s298 + $0x8] sm:$0xf]
        %v308 = vld [vmem:[%s298 + $0xc] sm:$0xf]
        %v309 = vld [vmem:[%s298 + $0x10] sm:$0xf]
        %v310 = vld [vmem:[%s298 + $0x14] sm:$0xf]
        %v311 = vld [vmem:[%s298 + $0x18] sm:$0xf]
        %v312 = vld [vmem:[%s298 + $0x1c] sm:$0xf]
        %v313 = vunpack.c.l.bf16 %v305
        %v314 = vunpack.c.l.bf16 %v306
        %v315 = vunpack.c.l.bf16 %v307
        %v316 = vunpack.c.l.bf16 %v308
        %v317 = vunpack.c.l.bf16 %v309
        %v318 = vunpack.c.l.bf16 %v310
        %v319 = vunpack.c.l.bf16 %v311
        %v320 = vunpack.c.l.bf16 %v312
        %v321 = vld [vmem:[%s290] sm:$0xff]
        %v322 = vld [vmem:[%s290 + $0x8] sm:$0xff]
        %v323 = vld [vmem:[%s290 + $0x10] sm:$0xff]
        %v324 = vld [vmem:[%s290 + $0x18] sm:$0xff]
        %v325 = vld [vmem:[%s290 + $0x20] sm:$0xff]
        %v326 = vld [vmem:[%s290 + $0x28] sm:$0xff]
        %v327 = vld [vmem:[%s290 + $0x30] sm:$0xff]
        %v328 = vld [vmem:[%s290 + $0x38] sm:$0xff]
        %330 = vset.pattern.permute.xlu0 0
        %331 = vperm.xlu0 %330, %v321
        %v332 = vpop.permute.xlu0 %331
        %335 = vset.pattern.permute.xlu0 0
        %336 = vperm.xlu0 %335, %v322
        %v337 = vpop.permute.xlu0 %336
        %340 = vset.pattern.permute.xlu0 0
        %341 = vperm.xlu0 %340, %v323
        %v342 = vpop.permute.xlu0 %341
        %345 = vset.pattern.permute.xlu0 0
        %346 = vperm.xlu0 %345, %v324
        %v347 = vpop.permute.xlu0 %346
        %350 = vset.pattern.permute.xlu0 0
        %351 = vperm.xlu0 %350, %v325
        %v352 = vpop.permute.xlu0 %351
        %355 = vset.pattern.permute.xlu0 0
        %356 = vperm.xlu0 %355, %v326
        %v357 = vpop.permute.xlu0 %356
        %360 = vset.pattern.permute.xlu0 0
        %361 = vperm.xlu0 %360, %v327
        %v362 = vpop.permute.xlu0 %361
        %365 = vset.pattern.permute.xlu0 0
        %366 = vperm.xlu0 %365, %v328
        %v367 = vpop.permute.xlu0 %366
        %v369 = vadd.f32 %v313, %v332
        %v370 = vadd.f32 %v314, %v337
        %v371 = vadd.f32 %v315, %v342
        %v372 = vadd.f32 %v316, %v347
        %v373 = vadd.f32 %v317, %v352
        %v374 = vadd.f32 %v318, %v357
        %v375 = vadd.f32 %v319, %v362
        %v376 = vadd.f32 %v320, %v367
        %v377 = vld [vmem:[%s293] sm:$0x1]
        %v379 = vperm.slane %v377, 0
        %v381 = vadd.f32 %v369, %v379
        %v382 = vadd.f32 %v370, %v379
        %v383 = vadd.f32 %v371, %v379
        %v384 = vadd.f32 %v372, %v379
        %v385 = vadd.f32 %v373, %v379
        %v386 = vadd.f32 %v374, %v379
        %v387 = vadd.f32 %v375, %v379
        %v388 = vadd.f32 %v376, %v379
        %vm389 = vcmp.gt.f32.partialorder %v381, 0.0
        %vm390 = vcmp.gt.f32.partialorder %v382, 0.0
        %vm391 = vcmp.gt.f32.partialorder %v383, 0.0
        %vm392 = vcmp.gt.f32.partialorder %v384, 0.0
        %vm393 = vcmp.gt.f32.partialorder %v385, 0.0
        %vm394 = vcmp.gt.f32.partialorder %v386, 0.0
        %vm395 = vcmp.gt.f32.partialorder %v387, 0.0
        %vm396 = vcmp.gt.f32.partialorder %v388, 0.0
        %v397 = vmul.f32 %v381, 0.2
        %v398 = vmul.f32 %v382, 0.2
        %v399 = vmul.f32 %v383, 0.2
        %v400 = vmul.f32 %v384, 0.2
        %v401 = vmul.f32 %v385, 0.2
        %v402 = vmul.f32 %v386, 0.2
        %v403 = vmul.f32 %v387, 0.2
        %v404 = vmul.f32 %v388, 0.2
        %v405 = vsel %vm389, %v381, %v397
        %v406 = vsel %vm390, %v382, %v398
        %v407 = vsel %vm391, %v383, %v399
        %v408 = vsel %vm392, %v384, %v400
        %v409 = vsel %vm393, %v385, %v401
        %v410 = vsel %vm394, %v386, %v402
        %v411 = vsel %vm395, %v387, %v403
        %v412 = vsel %vm396, %v388, %v404
        %vm413 = vcmask 523264
        %v414 = vsel %vm413, %v405, -inf
        %415 = vmax.xlane.f32.xlu0 %v414
        %v416 = vpop.xlane.xlu0 %415
        %v417 = vsel %vm413, %v406, -inf
        %418 = vmax.xlane.f32.xlu0 %v417
        %v419 = vpop.xlane.xlu0 %418
        %v420 = vsel %vm413, %v407, -inf
        %421 = vmax.xlane.f32.xlu0 %v420
        %v422 = vpop.xlane.xlu0 %421
        %v423 = vsel %vm413, %v408, -inf
        %424 = vmax.xlane.f32.xlu0 %v423
        %v425 = vpop.xlane.xlu0 %424
        %v426 = vsel %vm413, %v409, -inf
        %427 = vmax.xlane.f32.xlu0 %v426
        %v428 = vpop.xlane.xlu0 %427
        %v429 = vsel %vm413, %v410, -inf
        %430 = vmax.xlane.f32.xlu0 %v429
        %v431 = vpop.xlane.xlu0 %430
        %v432 = vsel %vm413, %v411, -inf
        %433 = vmax.xlane.f32.xlu0 %v432
        %v434 = vpop.xlane.xlu0 %433
        %v435 = vsel %vm413, %v412, -inf
        %436 = vmax.xlane.f32.xlu0 %v435
        %v437 = vpop.xlane.xlu0 %436
        %v438 = vsub.f32 %v405, %v416
        %v439 = vsub.f32 %v406, %v419
        %v440 = vsub.f32 %v407, %v422
        %v441 = vsub.f32 %v408, %v425
        %v442 = vsub.f32 %v409, %v428
        %v443 = vsub.f32 %v410, %v431
        %v444 = vsub.f32 %v411, %v434
        %v445 = vsub.f32 %v412, %v437
        %v446 = vmul.f32 %v438, 1.442695
        %v447 = vpow.pop %v446
        %v448 = vmul.f32 %v439, 1.442695
        %v449 = vpow.pop %v448
        %v450 = vmul.f32 %v440, 1.442695
        %v451 = vpow.pop %v450
        %v452 = vmul.f32 %v441, 1.442695
        %v453 = vpow.pop %v452
        %v454 = vmul.f32 %v442, 1.442695
        %v455 = vpow.pop %v454
        %v456 = vmul.f32 %v443, 1.442695
        %v457 = vpow.pop %v456
        %v458 = vmul.f32 %v444, 1.442695
        %v459 = vpow.pop %v458
        %v460 = vmul.f32 %v445, 1.442695
        %v461 = vpow.pop %v460
        %v462 = vsel %vm413, %v447, 0.0
        %463 = vadd.xlane.f32.xlu0 %v462
        %v464 = vpop.xlane.xlu0 %463
        %v465 = vsel %vm413, %v449, 0.0
        %466 = vadd.xlane.f32.xlu0 %v465
        %v467 = vpop.xlane.xlu0 %466
        %v468 = vsel %vm413, %v451, 0.0
        %469 = vadd.xlane.f32.xlu0 %v468
        %v470 = vpop.xlane.xlu0 %469
        %v471 = vsel %vm413, %v453, 0.0
        %472 = vadd.xlane.f32.xlu0 %v471
        %v473 = vpop.xlane.xlu0 %472
        %v474 = vsel %vm413, %v455, 0.0
        %475 = vadd.xlane.f32.xlu0 %v474
        %v476 = vpop.xlane.xlu0 %475
        %v477 = vsel %vm413, %v457, 0.0
        %478 = vadd.xlane.f32.xlu0 %v477
        %v479 = vpop.xlane.xlu0 %478
        %v480 = vsel %vm413, %v459, 0.0
        %481 = vadd.xlane.f32.xlu0 %v480
        %v482 = vpop.xlane.xlu0 %481
        %v483 = vsel %vm413, %v461, 0.0
        %484 = vadd.xlane.f32.xlu0 %v483
        %v485 = vpop.xlane.xlu0 %484
        %v486 = vrcp.pop %v464
        %v487 = vrcp.pop %v467
        %v488 = vrcp.pop %v470
        %v489 = vrcp.pop %v473
        %v490 = vrcp.pop %v476
        %v491 = vrcp.pop %v479
        %v492 = vrcp.pop %v482
        %v493 = vrcp.pop %v485
        %v494 = vmul.f32 %v447, %v486
        %v495 = vmul.f32 %v449, %v487
        %v496 = vmul.f32 %v451, %v488
        %v497 = vmul.f32 %v453, %v489
        %v498 = vmul.f32 %v455, %v490
        %v499 = vmul.f32 %v457, %v491
        %v500 = vmul.f32 %v459, %v492
        %v501 = vmul.f32 %v461, %v493
        %v502 = vpack.c.bf16 %v494, %v494
        %v503 = vpack.c.bf16 %v495, %v495
        %v504 = vpack.c.bf16 %v496, %v496
        %v505 = vpack.c.bf16 %v497, %v497
        %v506 = vpack.c.bf16 %v498, %v498
        %v507 = vpack.c.bf16 %v499, %v499
        %v508 = vpack.c.bf16 %v500, %v500
        %v509 = vpack.c.bf16 %v501, %v501
        %v510 = vld [vmem:[%s303] sm:$0xf]
        %v511 = vld [vmem:[%s303 + $0x4] sm:$0xf]
        %v512 = vld [vmem:[%s303 + $0x8] sm:$0xf]
        %v513 = vld [vmem:[%s303 + $0xc] sm:$0xf]
        %v514 = vld [vmem:[%s303 + $0x10] sm:$0xf]
        %v515 = vld [vmem:[%s303 + $0x14] sm:$0xf]
        %v516 = vld [vmem:[%s303 + $0x18] sm:$0xf]
        %v517 = vld [vmem:[%s303 + $0x1c] sm:$0xf]
        %v526 = vunpack.c.l.b16 %v502
        %v527 = vunpack.c.l.b16 %v503
        %v528 = vunpack.c.l.b16 %v504
        %v529 = vunpack.c.l.b16 %v505
        %v530 = vunpack.c.l.b16 %v506
        %v531 = vunpack.c.l.b16 %v507
        %v532 = vunpack.c.l.b16 %v508
        %v533 = vunpack.c.l.b16 %v509
        %v534 = vpack.c.b16 %v527, %v526
        %v535 = vpack.c.b16 %v529, %v528
        %v536 = vpack.c.b16 %v531, %v530
        %v537 = vpack.c.b16 %v533, %v532
        %v546 = vunpack.c.l.b16 %v510
        %v547 = vunpack.c.l.b16 %v511
        %v548 = vunpack.c.l.b16 %v512
        %v549 = vunpack.c.l.b16 %v513
        %v550 = vunpack.c.l.b16 %v514
        %v551 = vunpack.c.l.b16 %v515
        %v552 = vunpack.c.l.b16 %v516
        %v553 = vunpack.c.l.b16 %v517
        %v554 = vpack.c.b16 %v547, %v546
        %v555 = vpack.c.b16 %v549, %v548
        %v556 = vpack.c.b16 %v551, %v550
        %v557 = vpack.c.b16 %v553, %v552
        %v563 = vsel %vm413, %v534, 0
        %v566 = vsel %vm413, %v535, 0
        %v569 = vsel %vm413, %v536, 0
        %v572 = vsel %vm413, %v537, 0
        %574 = vmatpush.bf16.msra.mxu0 0
        %575 = vmatpush.bf16.msra.mxu0 0
        %576 = vmatpush.bf16.msra.mxu0 0
        %577 = vmatpush.bf16.msra.mxu0 0
        %578 = vmatpush.bf16.msra.mxu0 %v557
        %579 = vmatpush.bf16.msra.mxu0 %v556
        %580 = vmatpush.bf16.msra.mxu0 %v555
        %581 = vmatpush.bf16.msra.mxu0 %v554
        %582 = vmatmul.bf16.gmra.mxu0 %v563
        %v583 = vpop.f32.mrf.mxu0
        %v584 = vadd.f32 0.0, %v583
        %v585 = vpop.f32.mrf.mxu0
        %v586 = vadd.f32 0.0, %v585
        %587 = vmatmul.bf16.gmra.mxu0 %v566
        %v588 = vpop.f32.mrf.mxu0
        %v589 = vadd.f32 0.0, %v588
        %v590 = vpop.f32.mrf.mxu0
        %v591 = vadd.f32 0.0, %v590
        %592 = vmatmul.bf16.gmra.mxu0 %v569
        %v593 = vpop.f32.mrf.mxu0
        %v594 = vadd.f32 0.0, %v593
        %v595 = vpop.f32.mrf.mxu0
        %v596 = vadd.f32 0.0, %v595
        %597 = vmatmul.bf16.gmra.mxu0 %v572
        %v598 = vpop.f32.mrf.mxu0
        %v599 = vadd.f32 0.0, %v598
        %v600 = vpop.f32.mrf.mxu0
        %v601 = vadd.f32 0.0, %v600
        %602 = vdwg.mxu0
        %v603 = vld [vmem:[%s4] sm:$0x1]
        %v605 = vperm.slane %v603, 0
        %v607 = vadd.f32 %v584, %v605
        %v608 = vadd.f32 %v586, %v605
        %v609 = vadd.f32 %v589, %v605
        %v610 = vadd.f32 %v591, %v605
        %vm611 = vcmp.gt.f32.partialorder %v607, 0.0
        %vm612 = vcmp.gt.f32.partialorder %v608, 0.0
        %vm613 = vcmp.gt.f32.partialorder %v609, 0.0
        %vm614 = vcmp.gt.f32.partialorder %v610, 0.0
        %v615 = vmul.f32 %v607, 0.01
        %v616 = vmul.f32 %v608, 0.01
        %v617 = vmul.f32 %v609, 0.01
        %v618 = vmul.f32 %v610, 0.01
        %v619 = vsel %vm611, %v607, %v615
        %v620 = vsel %vm612, %v608, %v616
        %v621 = vsel %vm613, %v609, %v617
        %v622 = vsel %vm614, %v610, %v618
        %v623 = vld [vmem:[%s5] sm:$0x1]
        %v625 = vperm.slane %v623, 0
        %v627 = vadd.f32 %v594, %v625
        %v628 = vadd.f32 %v596, %v625
        %v629 = vadd.f32 %v599, %v625
        %v630 = vadd.f32 %v601, %v625
        %v631 = vadd.f32 %v619, %v627
        %v632 = vadd.f32 %v620, %v628
        %v633 = vadd.f32 %v621, %v629
        %v634 = vadd.f32 %v622, %v630
        %635 = vst [vmem:[%s285] sm:$0xff] %v631
        %636 = vst [vmem:[%s285 + $0x8] sm:$0xff] %v632
        %637 = vst [vmem:[%s285 + $0x10] sm:$0xff] %v633
        %638 = vst [vmem:[%s285 + $0x18] sm:$0xff] %v634
        %s639 = sand.u32 %s174, 1
        %s640 = scalar_lea.sflag [#allocation3], %s639
        %s641 = sand.u32 %s174, 1
        %s642 = smul.addr %s641, 32
        %s643 = scalar_lea.vmem [#allocation2], %s642
        // Predicated region
        $region45: #{tpu_custom_call.1} parent=43 // pred_check
          %p644 = pneg %p184
        $region46: #{tpu_custom_call.1} parent=43 // pred_check_branch
          %646 = sbr.rel (%p644) target = $region48
        $region47: #{tpu_custom_call.1} parent=43 // pred_region
          %648 = vsyncadd %s640, 0
          %s649 = smul.addr %s20, 4
          %s650 = smul.addr %s649, 8
          %s651 = scalar_lea.hbm %s6, %s650
          %s652 = sshll.u32 %s643, 4
          %s653 = int_to_ptr.vmem [resolvable:$true] %s652
          %s654 = sshll.u32 %s651, 4
          %s655 = int_to_ptr.hbm [resolvable:$true] %s654
          %660 = dma.vmem_to_hbm [thread:$0]  %s653, 512, %s655, %s640, 128, 128, 8
        $region48: #{tpu_custom_call.1} parent=43 // pred_fallthru
          _
      $region44: #{tpu_custom_call.1} parent=5 // pred_fallthru
        _
      %p661 = scmp.le.s32.totalorder 2, %s15
      // Predicated region
      $region49: #{tpu_custom_call.1} parent=5 // pred_check
        %p662 = pneg %p661
      $region50: #{tpu_custom_call.1} parent=5 // pred_check_branch
        %664 = sbr.rel (%p662) target = $region52
      $region51: #{tpu_custom_call.1} parent=5 // pred_region
        %s665 = ssub.s32 %s15, 2
        // Predicated region
        $region53: #{tpu_custom_call.1} parent=51 // pred_check
          %p666 = pneg %p190
        $region54: #{tpu_custom_call.1} parent=51 // pred_check_branch
          %668 = sbr.rel (%p666) target = $region56
        $region55: #{tpu_custom_call.1} parent=51 // pred_region
          %s669 = sand.u32 %s175, 1
          %s670 = scalar_lea.sflag [#allocation3], %s669
          %s671 = sand.u32 %s175, 1
          %s672 = smul.addr %s671, 32
          %s673 = scalar_lea.vmem [#allocation2], %s672
          %675 = dma.done %s670, 512
        $region56: #{tpu_custom_call.1} parent=51 // pred_fallthru
          _
      $region52: #{tpu_custom_call.1} parent=5 // pred_fallthru
        _
    $region6: #{tpu_custom_call.1} parent=1 // loop_footer
      %s19 = sadd.s32 1, %s15
    $region7: #{tpu_custom_call.1} parent=1 // loop_footer_branch
      %14 = sbr.rel target = $region3
    $region8: #{tpu_custom_call.1} parent=1 // loop_exit
      _
    %676 = vsyncpa [#allocation3], 1
    %s677 = scalar_lea.sflag [#allocation3], 1
    %678 = vsyncpa %s677, 1

</llo_original>
